<compile_context>
chip_gen: v6e
topology: v6e:2x2x1
jax: 0.10.0
libtpu: 0.0.40
codegen_flags: <defaults>
</compile_context>

<pallas_src>
import functools
import math

import jax
import jax.numpy as jnp
from jax.experimental import pallas as pl
from jax.experimental.pallas import tpu as pltpu

EPS = 1e-5


# --------------------------------------------------------------------------- #
# Kernels
# --------------------------------------------------------------------------- #
def _ln_body(x, w, b, out_dtype, single_pass):
    xf = x.astype(jnp.float32)                               # (block_rows, ndim)
    inv_n = 1.0 / xf.shape[-1]                               # compile-time constant
    if single_pass:
        # Single pass: sum(x) and sum(x*x) computed off the same tile read.
        s1 = jnp.sum(xf, axis=-1, keepdims=True)
        s2 = jnp.sum(xf * xf, axis=-1, keepdims=True)
        mean = s1 * inv_n
        var = jnp.maximum(s2 * inv_n - mean * mean, 0.0)     # clamp cancellation
        centered = xf - mean
    else:
        # Two-pass (numerically safest for f32 inputs).
        mean = jnp.sum(xf, axis=-1, keepdims=True) * inv_n
        centered = xf - mean
        var = jnp.sum(centered * centered, axis=-1, keepdims=True) * inv_n
    scale = jax.lax.rsqrt(var + EPS) * w.astype(jnp.float32)  # (rows,1)*(1,ndim)
    y = centered * scale
    if b is not None:
        y = y + b.astype(jnp.float32)
    return y.astype(out_dtype)                                # cast last -> packed stores


def _ln_kernel_bias(x_ref, w_ref, b_ref, o_ref, *, single_pass):
    o_ref[...] = _ln_body(x_ref[...], w_ref[...], b_ref[...], o_ref.dtype, single_pass)


def _ln_kernel_nobias(x_ref, w_ref, o_ref, *, single_pass):
    o_ref[...] = _ln_body(x_ref[...], w_ref[...], None, o_ref.dtype, single_pass)


# --------------------------------------------------------------------------- #
# Tiling / VMEM policy
# --------------------------------------------------------------------------- #
def _row_multiple(dtype) -> int:
    # Sublane packing multiple: f32 -> 8, bf16 -> 16, int8/fp8 -> 32.
    itemsize = jnp.dtype(dtype).itemsize
    return max(8, 32 // max(1, itemsize))


@functools.lru_cache(maxsize=1)
def _tpu_vmem_capacity_bytes() -> int:
    """Physical VMEM of the current chip; conservative (v7x) fallback."""
    try:
        return int(pltpu.get_tpu_info().vmem_capacity_bytes)
    except Exception:  # no TPU / query unsupported
        return 64 << 20


def _choose_block_rows(rows, row_mult, io_row_bytes, per_row_footprint,
                       target_tile_bytes, vmem_budget_bytes) -> int:
    """Largest legal row-block that (a) hits ~target tile size for the I/O
    stream and (b) keeps double-buffered I/O + f32 intermediates inside the
    scoped-VMEM budget."""
    if rows <= row_mult:
        return rows                                          # full-extent block is always legal
    br_target = max(1, target_tile_bytes // max(1, io_row_bytes))
    br_vmem = max(1, (vmem_budget_bytes - (2 << 20)) // max(1, per_row_footprint))
    br = min(br_target, br_vmem, 8192, rows)                  # cap raised 1024 -> 8192
    br = max(row_mult, (br // row_mult) * row_mult)
    # Never exceed the round-multiple that fits in rows; the ragged edge block
    # is handled by Pallas masking (rows are independent, never written back).
    br = min(br, max(row_mult, (rows // row_mult) * row_mult))
    return br


# --------------------------------------------------------------------------- #
# Wrapper
# --------------------------------------------------------------------------- #
@functools.partial(jax.jit, static_argnames=("block_rows",))
def layer_norm(x, weight, bias=None, *, block_rows=None):
    """x: (..., ndim); weight: (ndim,); bias: (ndim,) or None."""
    orig_shape = x.shape
    ndim = weight.shape[0]
    assert orig_shape[-1] == ndim
    rows = math.prod(orig_shape[:-1]) if len(orig_shape) > 1 else 1
    x2 = x.reshape(rows, ndim)

    itemsize = jnp.dtype(x.dtype).itemsize
    row_mult = _row_multiple(x.dtype)
    single_pass = itemsize < 4                         # bf16/fp16/fp8: one reduction pass

    # Generation-aware VMEM policy.
    vmem_cap = _tpu_vmem_capacity_bytes()
    vmem_ceiling = (vmem_cap * 3) // 4                 # 96 MiB on 128-MiB parts, 48 MiB on v7x
    target_tile = (8 << 20) if vmem_cap >= (100 << 20) else (4 << 20)

    io_row_bytes = ndim * itemsize                     # one row of input or output
    f32_row_bytes = ndim * 4
    n_f32_temps = 2 if single_pass else 3              # upcast + centered(+square) materialize
    per_row_footprint = 4 * io_row_bytes + n_f32_temps * f32_row_bytes  # 2x-in + 2x-out dbl-buf

    auto_max = _choose_block_rows(rows, row_mult, io_row_bytes, per_row_footprint,
                                  target_tile, vmem_ceiling)
    if block_rows is None:
        block_rows = auto_max
    else:
        # Guard: clamp user-supplied block_rows to the VMEM-derived maximum and
        # to a legal sublane multiple; never silently under-provision VMEM.
        if rows <= row_mult:
            block_rows = rows
        else:
            block_rows = min(int(block_rows), auto_max)
            block_rows = max(row_mult, (block_rows // row_mult) * row_mult)

    n_blocks = pl.cdiv(rows, block_rows)

    w2 = weight.reshape(1, ndim)
    param_spec = pl.BlockSpec((1, ndim), lambda i: (0, 0))
    x_spec = pl.BlockSpec((block_rows, ndim), lambda i: (i, 0))

    if bias is not None:
        kernel = functools.partial(_ln_kernel_bias, single_pass=single_pass)
        operands = (x2, w2, bias.reshape(1, ndim))
        in_specs = [x_spec, param_spec, param_spec]
    else:
        kernel = functools.partial(_ln_kernel_nobias, single_pass=single_pass)
        operands = (x2, w2)
        in_specs = [x_spec, param_spec]

    # Scoped-VMEM request sized from the actual per-step footprint (I/O double
    # buffers + f32 intermediates + params + headroom), clamped to the
    # generation-aware ceiling.
    footprint = per_row_footprint * block_rows + 4 * ndim * 4 + (2 << 20)
    vmem_limit = int(min(max(footprint, 32 << 20), vmem_ceiling))

    out = pl.pallas_call(
        kernel,
        out_shape=jax.ShapeDtypeStruct((rows, ndim), x.dtype),
        grid_spec=pltpu.PrefetchScalarGridSpec(
            num_scalar_prefetch=0,
            grid=(n_blocks,),
            in_specs=in_specs,
            out_specs=x_spec,
        ),
        compiler_params=pltpu.CompilerParams(
            dimension_semantics=("parallel",),
            vmem_limit_bytes=vmem_limit,
        ),
    )(*operands)

    return out.reshape(orig_shape)


# --------------------------------------------------------------------------- #
# Reference + self-test
# --------------------------------------------------------------------------- #
def _reference_layer_norm(x, weight, bias):
    xf = x.astype(jnp.float32)
    mean = jnp.mean(xf, axis=-1, keepdims=True)
    var = jnp.mean((xf - mean) ** 2, axis=-1, keepdims=True)
    y = (xf - mean) * jax.lax.rsqrt(var + EPS) * weight.astype(jnp.float32)
    if bias is not None:
        y = y + bias.astype(jnp.float32)
    return y.astype(x.dtype)


if __name__ == "__main__":
    key = jax.random.PRNGKey(0)
    kx, kw, kb, kx2 = jax.random.split(key, 4)
    batch, seq, hidden = 2, 8, 32

    x = jax.random.normal(kx, (batch, seq, hidden), dtype=jnp.float32)

    # Parameters: module init is weight=ones, bias=zeros; perturb them
    # deterministically so the affine part of the kernel is actually exercised.
    weight = jnp.ones((hidden,), jnp.float32) + 0.1 * jax.random.normal(kw, (hidden,), jnp.float32)
    bias = 0.1 * jax.random.normal(kb, (hidden,), jnp.float32)

    # bias=True path (f32 -> two-pass variance).
    out = jax.block_until_ready(layer_norm(x, weight, bias))
    ref = _reference_layer_norm(x, weight, bias)
    assert jnp.allclose(out, ref, atol=2e-5, rtol=2e-5)

    # bias=False path (module constructed with bias=False).
    out_nb = jax.block_until_ready(layer_norm(x, weight, None))
    ref_nb = _reference_layer_norm(x, weight, None)
    assert jnp.allclose(out_nb, ref_nb, atol=2e-5, rtol=2e-5)

    # Ragged-row path: rows % block_rows != 0 exercises the pad-free masked
    # edge block (rows = 2*7 = 14, block_rows = 8 -> grid of 2, last block ragged).
    x_odd = jax.random.normal(kx2, (2, 7, hidden), dtype=jnp.float32)
    out_odd = jax.block_until_ready(layer_norm(x_odd, weight, bias))
    ref_odd = _reference_layer_norm(x_odd, weight, bias)
    assert jnp.allclose(out_odd, ref_odd, atol=2e-5, rtol=2e-5)

    # Caller-supplied block_rows larger than rows: exercises the VMEM/legality
    # guard (clamped back to the auto maximum).
    out_clamp = jax.block_until_ready(layer_norm(x, weight, bias, block_rows=1024))
    assert jnp.allclose(out_clamp, ref, atol=2e-5, rtol=2e-5)

    # bf16 path: exercises the single-pass (sum / sum-of-squares) variance.
    x_bf16 = x.astype(jnp.bfloat16)
    out_bf = jax.block_until_ready(layer_norm(x_bf16, weight, bias))
    ref_bf = _reference_layer_norm(x_bf16, weight, bias)
    assert jnp.allclose(out_bf.astype(jnp.float32), ref_bf.astype(jnp.float32),
                        atol=2e-2, rtol=2e-2)

    print("KERNEL_OK")
</pallas_src>

<mosaic_0001>
module attributes {stable_mosaic.version = 11 : i64} {
  func.func @_ln_kernel_bias(%arg0: i32, %arg1: memref<16x32xf32, #tpu.memory_space<vmem>>, %arg2: memref<1x32xf32, #tpu.memory_space<vmem>>, %arg3: memref<1x32xf32, #tpu.memory_space<vmem>>, %arg4: memref<16x32xf32, #tpu.memory_space<vmem>>) attributes {dimension_semantics = [#tpu.dimension_semantics<parallel>], iteration_bounds = array<i64: 1>, scalar_prefetch = 0 : i64, scratch_operands = 0 : i64, tpu.core_type = #tpu.core_type<tc>, window_params = [{transform_indices = @transform_0, window_bounds = array<i64: 16, 32>}, {pipeline_mode = #tpu.pipeline_mode<synchronous>, transform_indices = @transform_1, window_bounds = array<i64: 1, 32>}, {pipeline_mode = #tpu.pipeline_mode<synchronous>, transform_indices = @transform_2, window_bounds = array<i64: 1, 32>}, {transform_indices = @transform_3, window_bounds = array<i64: 16, 32>}]} {
    %c0 = arith.constant 0 : index
    %c0_0 = arith.constant 0 : index
    %0 = vector.load %arg1[%c0, %c0_0] : memref<16x32xf32, #tpu.memory_space<vmem>>, vector<16x32xf32>
    %c0_1 = arith.constant 0 : index
    %c0_2 = arith.constant 0 : index
    %1 = vector.load %arg2[%c0_1, %c0_2] : memref<1x32xf32, #tpu.memory_space<vmem>>, vector<1x32xf32>
    %c0_3 = arith.constant 0 : index
    %c0_4 = arith.constant 0 : index
    %2 = vector.load %arg3[%c0_3, %c0_4] : memref<1x32xf32, #tpu.memory_space<vmem>>, vector<1x32xf32>
    %cst = arith.constant dense<0.000000e+00> : vector<16xf32>
    %3 = vector.multi_reduction <add>, %0, %cst [1] : vector<16x32xf32> to vector<16xf32>
    %4 = vector.shape_cast %3 : vector<16xf32> to vector<16x1xf32>
    %cst_5 = arith.constant 3.125000e-02 : f32
    %5 = vector.broadcast %cst_5 : f32 to vector<16x1xf32>
    %6 = arith.mulf %4, %5 : vector<16x1xf32>
    %7 = vector.broadcast %6 : vector<16x1xf32> to vector<16x32xf32>
    %8 = arith.subf %0, %7 : vector<16x32xf32>
    %9 = arith.mulf %8, %8 : vector<16x32xf32>
    %cst_6 = arith.constant dense<0.000000e+00> : vector<16xf32>
    %10 = vector.multi_reduction <add>, %9, %cst_6 [1] : vector<16x32xf32> to vector<16xf32>
    %11 = vector.shape_cast %10 : vector<16xf32> to vector<16x1xf32>
    %cst_7 = arith.constant 3.125000e-02 : f32
    %12 = vector.broadcast %cst_7 : f32 to vector<16x1xf32>
    %13 = arith.mulf %11, %12 : vector<16x1xf32>
    %cst_8 = arith.constant 9.99999974E-6 : f32
    %14 = vector.broadcast %cst_8 : f32 to vector<16x1xf32>
    %15 = arith.addf %13, %14 : vector<16x1xf32>
    %16 = math.rsqrt %15 : vector<16x1xf32>
    %17 = vector.broadcast %16 : vector<16x1xf32> to vector<16x32xf32>
    %18 = vector.broadcast %1 : vector<1x32xf32> to vector<16x32xf32>
    %19 = arith.mulf %17, %18 : vector<16x32xf32>
    %20 = arith.mulf %8, %19 : vector<16x32xf32>
    %21 = vector.broadcast %2 : vector<1x32xf32> to vector<16x32xf32>
    %22 = arith.addf %20, %21 : vector<16x32xf32>
    %c0_9 = arith.constant 0 : index
    %c0_10 = arith.constant 0 : index
    %23 = vector.load %arg4[%c0_9, %c0_10] : memref<16x32xf32, #tpu.memory_space<vmem>>, vector<16x32xf32>
    tpu.vector_store %arg4[%c0_9, %c0_10], %22 {strides = array<i32>} : memref<16x32xf32, #tpu.memory_space<vmem>>, vector<16x32xf32>,
    return
  }
  func.func @transform_0(%arg0: i32) -> (i32, i32) {
    %c0_i32 = arith.constant 0 : i32
    %c0_i32_0 = arith.constant 0 : i32
    return %arg0, %c0_i32 : i32, i32
  }
  func.func @transform_1(%arg0: i32) -> (i32, i32) {
    %c0_i32 = arith.constant 0 : i32
    %c0_i32_0 = arith.constant 0 : i32
    %c0_i32_1 = arith.constant 0 : i32
    return %c0_i32, %c0_i32_0 : i32, i32
  }
  func.func @transform_2(%arg0: i32) -> (i32, i32) {
    %c0_i32 = arith.constant 0 : i32
    %c0_i32_0 = arith.constant 0 : i32
    %c0_i32_1 = arith.constant 0 : i32
    return %c0_i32, %c0_i32_0 : i32, i32
  }
  func.func @transform_3(%arg0: i32) -> (i32, i32) {
    %c0_i32 = arith.constant 0 : i32
    %c0_i32_0 = arith.constant 0 : i32
    return %arg0, %c0_i32 : i32, i32
  }
}

</mosaic_0001>

<llo_original>
// kernel: layer_norm.1
$region0: #{layer_norm.1}
  #allocation0 [shape = 'u32[]', space=smem, size = 0x4, offset = 0x4, fixed_abs, tag = 'smem constant byte address 0x4 - core index']
  #allocation1 [shape = 'u32[144,128]{1,0:T(1,128)}', space=vmem, size = 0x12000, scoped, tag = 'internal scratch']
  %s0 = inlined_call_operand.hbm [shape: f32[16,32], index: 0, kind: input, shape index: {}]
  %s1 = inlined_call_operand.vmem [shape: f32[1,32], index: 1, kind: input, shape index: {}]
  %s2 = inlined_call_operand.vmem [shape: f32[1,32], index: 2, kind: input, shape index: {}]
  %s3 = inlined_call_operand.hbm [shape: f32[16,32], index: 3, kind: output, shape index: {}]
  %s4 = sld [smem:[#allocation0]]
  $region26: #{layer_norm.1} parent=0
    _
  %s6 = ssub.s32 1, %s4
  %s7 = scalar_select 0, %s6, %s4
  $region1: #{layer_norm.1} parent=0
    #allocation2 [shape = 'u8[8192]{0}', space=vmem, size = 0x2000, scoped, tag = 'input window, operand 0, single buffered']
    #allocation3 [shape = 's32[1]{0}', space=sflag, size = 0x4, scoped, tag = 'scoped memory for layer_norm.1']
    #allocation4 [shape = 's32[1]{0}', space=sflag, size = 0x4, scoped, tag = 'scoped memory for layer_norm.1']
    #allocation5 [shape = 'u8[8192]{0}', space=vmem, size = 0x2000, scoped, tag = 'output window, operand 0, single buffered']
    %8 = vsyncpa [#allocation3], 0
    %9 = vsyncpa [#allocation4], 0
    // Predicated region
    $region2: #{layer_norm.1} parent=1 // pred_check
      _
    $region3: #{layer_norm.1} parent=1 // pred_check_branch
      %11 = sbr.rel (0) target = $region5
    $region4: #{layer_norm.1} parent=1 // pred_region
      %s13 = ssub.s32 256, 256
      %14 = vsyncadd [#allocation3], %s13
      %s15 = sshll.u32 [#allocation2], 4
      %s16 = int_to_ptr.vmem [resolvable:$true] %s15
      %21 = dma.hbm_to_vmem [thread:$0]  %s0, 256, %s16, [#allocation3], 128, 128, 8
    $region5: #{layer_norm.1} parent=1 // pred_fallthru
      _
    // Predicated region
    $region6: #{layer_norm.1} parent=1 // pred_check
      _
    $region7: #{layer_norm.1} parent=1 // pred_check_branch
      %23 = sbr.rel (0) target = $region9
    $region8: #{layer_norm.1} parent=1 // pred_region
      _
    $region9: #{layer_norm.1} parent=1 // pred_fallthru
      _
    // Predicated region
    $region10: #{layer_norm.1} parent=1 // pred_check
      _
    $region11: #{layer_norm.1} parent=1 // pred_check_branch
      %25 = sbr.rel (0) target = $region13
    $region12: #{layer_norm.1} parent=1 // pred_region
      _
    $region13: #{layer_norm.1} parent=1 // pred_fallthru
      _
    // Predicated region
    $region14: #{layer_norm.1} parent=1 // pred_check
      _
    $region15: #{layer_norm.1} parent=1 // pred_check_branch
      %27 = sbr.rel (0) target = $region17
    $region16: #{layer_norm.1} parent=1 // pred_region
      %28 = dma.done [#allocation3], 256
    $region17: #{layer_norm.1} parent=1 // pred_fallthru
      _
    %v29 = vld [vmem:[#allocation2] sm:$0xff]
    %v30 = vld [vmem:[#allocation2 + $0x8] sm:$0xff]
    %v31 = vld [vmem:[%s1] sm:$0x1]
    %v32 = vld [vmem:[%s2] sm:$0x1]
    %vm33 = vcmask 261120
    %v34 = vsel %vm33, %v29, 0.0
    %35 = vadd.xlane.f32.xlu0 %v34
    %v36 = vpop.xlane.xlu0 %35
    %v37 = vsel %vm33, %v30, 0.0
    %38 = vadd.xlane.f32.xlu0 %v37
    %v39 = vpop.xlane.xlu0 %38
    %v40 = vmul.f32 %v36, 0.03125
    %v41 = vmul.f32 %v39, 0.03125
    %v42 = vsub.f32 %v29, %v40
    %v43 = vsub.f32 %v30, %v41
    %v44 = vmul.f32 %v42, %v42
    %v45 = vmul.f32 %v43, %v43
    %v46 = vsel %vm33, %v44, 0.0
    %47 = vadd.xlane.f32.xlu0 %v46
    %v48 = vpop.xlane.xlu0 %47
    %v49 = vsel %vm33, %v45, 0.0
    %50 = vadd.xlane.f32.xlu0 %v49
    %v51 = vpop.xlane.xlu0 %50
    %v52 = vmul.f32 %v48, 0.03125
    %v53 = vmul.f32 %v51, 0.03125
    %v54 = vadd.f32 %v52, 1e-05
    %v55 = vadd.f32 %v53, 1e-05
    %v56 = vrsqrt.pop %v54
    %v57 = vrsqrt.pop %v55
    %v59 = vlaneseq
    %v60 = vshrl.u32 %v59, 7
    %v61 = vsub.s32 0, %v60
    %v62 = vrot.slane %v31, %v61
    %v64 = vmul.f32 %v56, %v62
    %v65 = vmul.f32 %v57, %v62
    %v66 = vmul.f32 %v42, %v64
    %v67 = vmul.f32 %v43, %v65
    %v69 = vlaneseq
    %v70 = vshrl.u32 %v69, 7
    %v71 = vsub.s32 0, %v70
    %v72 = vrot.slane %v32, %v71
    %v74 = vadd.f32 %v66, %v72
    %v75 = vadd.f32 %v67, %v72
    %76 = vst.msk [vmem:[#allocation5] sm:$0xff] %vm33, %v74
    %77 = vst.msk [vmem:[#allocation5 + $0x8] sm:$0xff] %vm33, %v75
    // Predicated region
    $region18: #{layer_norm.1} parent=1 // pred_check
      _
    $region19: #{layer_norm.1} parent=1 // pred_check_branch
      %79 = sbr.rel (0) target = $region21
    $region20: #{layer_norm.1} parent=1 // pred_region
      %s81 = ssub.s32 256, 256
      %82 = vsyncadd [#allocation4], %s81
      %s83 = sshll.u32 [#allocation5], 4
      %s84 = int_to_ptr.vmem [resolvable:$true] %s83
      %89 = dma.vmem_to_hbm [thread:$0]  %s84, 256, %s3, [#allocation4], 128, 128, 8
    $region21: #{layer_norm.1} parent=1 // pred_fallthru
      _
    // Predicated region
    $region22: #{layer_norm.1} parent=1 // pred_check
      _
    $region23: #{layer_norm.1} parent=1 // pred_check_branch
      %91 = sbr.rel (0) target = $region25
    $region24: #{layer_norm.1} parent=1 // pred_region
      %92 = dma.done [#allocation4], 256
    $region25: #{layer_norm.1} parent=1 // pred_fallthru
      _
    %93 = vsyncpa [#allocation3], 1
    %94 = vsyncpa [#allocation4], 1

</llo_original>
